<compile_context>
chip_gen: v7x
topology: tpu7x:2x2x1
jax: 0.10.0
libtpu: 0.0.40
codegen_flags: <defaults>
</compile_context>

<pallas_src>
import functools

import jax
import jax.numpy as jnp
from jax.experimental import pallas as pl
from jax.experimental.pallas import tpu as pltpu


_LANE = 128


def _round_up(n, m):
    return ((n + m - 1) // m) * m


def _zero_index_map(i):
    return (0, 0)


def _plan_layers(block_shapes, wt_shapes):
    """Static per-layer plan: (use_xw_first, apply_relu), order chosen by FLOPs."""
    n_layers = len(block_shapes)
    meta = []
    for i in range(n_layers):
        n_dst, n_src = block_shapes[i]
        f_in, f_out = wt_shapes[i]
        flops_ax_then_w = n_dst * n_src * f_in + n_dst * f_in * f_out
        flops_xw_then_a = n_src * f_in * f_out + n_dst * n_src * f_out
        meta.append((flops_xw_then_a < flops_ax_then_w, i < n_layers - 1))
    return tuple(meta)


def _fused_gcn_kernel(*refs, layer_meta):
    # refs = (x, (A_0, Wt_0, b_0), ..., (A_{L-1}, Wt_{L-1}, b_{L-1}), out)
    x_ref = refs[0]
    o_ref = refs[-1]
    num_layers = len(layer_meta)

    h = x_ref[...]                                        # bf16 (n_0, Fp_0)
    r = 1
    for li, (xw_first, apply_relu) in enumerate(layer_meta):
        a_ref, w_ref, b_ref = refs[r], refs[r + 1], refs[r + 2]
        r += 3
        adj = a_ref[...]                                  # bf16 (n_dst, n_src)
        w_t = w_ref[...]                                  # bf16 (Fp_in, Fp_out)
        bias = b_ref[...]                                 # f32  (1, Fp_out)
        if xw_first:                                      # A @ (X @ W)
            xw = jnp.dot(h, w_t, preferred_element_type=jnp.float32)
            h32 = jnp.dot(adj, xw.astype(jnp.bfloat16),
                          preferred_element_type=jnp.float32)
        else:                                             # (A @ X) @ W
            ax = jnp.dot(adj, h, preferred_element_type=jnp.float32)
            h32 = jnp.dot(ax.astype(jnp.bfloat16), w_t,
                          preferred_element_type=jnp.float32)
        h32 = h32 + bias                                  # NodeUpdate linear bias
        if apply_relu:                                    # NodeUpdate activation
            h32 = jnp.maximum(h32, 0.0)
        if li == num_layers - 1:
            o_ref[...] = h32.astype(o_ref.dtype)
        else:
            h = h32.astype(jnp.bfloat16)


class GCNSamplingPallas:
    """JAX/Pallas port of GCNSampling (dropout p=0.0 -> identity, eval mode)."""

    def __init__(self, in_feats, n_hidden, n_classes, n_layers, key):
        dims = [(in_feats, n_hidden)]
        for _ in range(1, n_layers - 1):
            dims.append((n_hidden, n_hidden))
        dims.append((n_hidden, n_classes))

        self.n_layers = n_layers
        self.n_classes = n_classes
        self.params = []        # original torch-layout f32 params (for reference)
        self._wt_pad = []       # pre-transposed, 128-lane-padded bf16 W^T
        self._b_pad = []        # (1, Fp_out) f32 bias, zero-padded
        for (fi, fo) in dims:
            key, kw, kb = jax.random.split(key, 3)
            bound = 1.0 / jnp.sqrt(fi)
            w = jax.random.uniform(kw, (fo, fi), jnp.float32, -bound, bound)
            b = jax.random.uniform(kb, (fo,), jnp.float32, -bound, bound)
            self.params.append((w, b))

            fi_p, fo_p = _round_up(fi, _LANE), _round_up(fo, _LANE)
            wt = jnp.pad(w.T, ((0, fi_p - fi), (0, fo_p - fo)))
            self._wt_pad.append(wt.astype(jnp.bfloat16))
            self._b_pad.append(jnp.pad(b, (0, fo_p - fo)).reshape(1, fo_p))

    def __call__(self, features, blocks):
        """features: (n_nodes_layer0, in_feats) f32; blocks[i]: (n_{i+1}, n_i) f32."""
        assert len(blocks) == self.n_layers
        f_in0 = features.shape[1]
        fp0 = self._wt_pad[0].shape[0]
        x = jnp.pad(features, ((0, 0), (0, fp0 - f_in0))).astype(jnp.bfloat16)
        adjs = [blk.astype(jnp.bfloat16) for blk in blocks]

        meta = _plan_layers([blk.shape for blk in blocks],
                            [wt.shape for wt in self._wt_pad])

        inputs = [x]
        in_specs = [pl.BlockSpec(x.shape, _zero_index_map)]
        for i in range(self.n_layers):
            for arr in (adjs[i], self._wt_pad[i], self._b_pad[i]):
                inputs.append(arr)
                in_specs.append(pl.BlockSpec(arr.shape, _zero_index_map))

        out_rows = blocks[-1].shape[0]
        out_cols = self._wt_pad[-1].shape[1]      # lane-dense: multiple of 128

        kernel = functools.partial(_fused_gcn_kernel, layer_meta=meta)
        out_pad = pl.pallas_call(
            kernel,
            out_shape=jax.ShapeDtypeStruct((out_rows, out_cols), jnp.float32),
            grid=(1,),
            in_specs=in_specs,
            out_specs=pl.BlockSpec((out_rows, out_cols), _zero_index_map),
            compiler_params=pltpu.CompilerParams(
                dimension_semantics=("arbitrary",)),
        )(*inputs)
        return out_pad[:, : self.n_classes]


def _reference_f32(features, blocks, params):
    """Original full-precision semantics (aggregate -> linear -> relu)."""
    a = features
    for i, (w, b) in enumerate(params):
        h = blocks[i] @ a
        h = h @ w.T + b
        if i < len(params) - 1:
            h = jnp.maximum(h, 0.0)
        a = h
    return a


def _reference_mixed(features, blocks, params, layer_meta):
    """Mirror the kernel's mixed-precision schedule (bf16 operands, f32 acc)."""
    bf = jnp.bfloat16
    h = features.astype(bf)
    for i, ((w, b), (xw_first, relu)) in enumerate(zip(params, layer_meta)):
        adj = blocks[i].astype(bf)
        w_t = w.T.astype(bf)
        if xw_first:
            t = jnp.dot(h, w_t, preferred_element_type=jnp.float32).astype(bf)
            h32 = jnp.dot(adj, t, preferred_element_type=jnp.float32)
        else:
            t = jnp.dot(adj, h, preferred_element_type=jnp.float32).astype(bf)
            h32 = jnp.dot(t, w_t, preferred_element_type=jnp.float32)
        h32 = h32 + b
        if relu:
            h32 = jnp.maximum(h32, 0.0)
        h = h32.astype(bf) if i < len(params) - 1 else h32
    return h


def _make_block(key, n_dst, n_src, fanout):
    """Dense row-normalized sampled-neighbor matrix (each dst averages `fanout`
    sampled src nodes)."""
    idx = jax.random.randint(key, (n_dst, fanout), 0, n_src)
    onehot = jax.nn.one_hot(idx, n_src, dtype=jnp.float32)   # (n_dst, fanout, n_src)
    counts = onehot.sum(axis=1)                              # (n_dst, n_src)
    row_sum = counts.sum(axis=1, keepdims=True)
    return counts / row_sum                                  # rows sum to 1 (mean)


if __name__ == "__main__":
    key = jax.random.PRNGKey(0)

    in_feats, n_hidden, n_classes, n_layers = 32, 32, 8, 3
    # NodeFlow layer node counts (layer 0 .. layer n_layers)
    node_counts = [64, 32, 16, 8]
    fanout = 4

    key, kf, kmodel = jax.random.split(key, 3)
    features = jax.random.normal(kf, (node_counts[0], in_feats), jnp.float32)

    blocks = []
    for i in range(n_layers):
        key, kb = jax.random.split(key)
        blocks.append(_make_block(kb, node_counts[i + 1], node_counts[i], fanout))

    model = GCNSamplingPallas(in_feats, n_hidden, n_classes, n_layers, kmodel)

    out = jax.block_until_ready(model(features, blocks))
    assert out.shape == (node_counts[-1], n_classes)

    meta = _plan_layers([b.shape for b in blocks],
                        [wt.shape for wt in model._wt_pad])
    ref_mp = _reference_mixed(features, blocks, model.params, meta)
    ref_f32 = _reference_f32(features, blocks, model.params)

    assert jnp.allclose(out, ref_mp, atol=1e-3, rtol=1e-3), \
        "mismatch vs mixed-precision reference"
    assert jnp.allclose(out, ref_f32, atol=3e-2, rtol=3e-2), \
        "drift vs f32 reference too large"

    print("KERNEL_OK")
</pallas_src>

<mosaic_0001>
module attributes {stable_mosaic.version = 11 : i64} {
  func.func @_fused_gcn_kernel(%arg0: i32, %arg1: memref<64x128xbf16, #tpu.memory_space<vmem>>, %arg2: memref<32x64xbf16, #tpu.memory_space<vmem>>, %arg3: memref<128x128xbf16, #tpu.memory_space<vmem>>, %arg4: memref<1x128xf32, #tpu.memory_space<vmem>>, %arg5: memref<16x32xbf16, #tpu.memory_space<vmem>>, %arg6: memref<128x128xbf16, #tpu.memory_space<vmem>>, %arg7: memref<1x128xf32, #tpu.memory_space<vmem>>, %arg8: memref<8x16xbf16, #tpu.memory_space<vmem>>, %arg9: memref<128x128xbf16, #tpu.memory_space<vmem>>, %arg10: memref<1x128xf32, #tpu.memory_space<vmem>>, %arg11: memref<8x128xf32, #tpu.memory_space<vmem>>) attributes {dimension_semantics = [#tpu.dimension_semantics<arbitrary>], iteration_bounds = array<i64: 1>, scalar_prefetch = 0 : i64, scratch_operands = 0 : i64, tpu.core_type = #tpu.core_type<tc>, window_params = [{pipeline_mode = #tpu.pipeline_mode<synchronous>, transform_indices = @transform_0, window_bounds = array<i64: 64, 128>}, {pipeline_mode = #tpu.pipeline_mode<synchronous>, transform_indices = @transform_1, window_bounds = array<i64: 32, 64>}, {pipeline_mode = #tpu.pipeline_mode<synchronous>, transform_indices = @transform_2, window_bounds = array<i64: 128, 128>}, {pipeline_mode = #tpu.pipeline_mode<synchronous>, transform_indices = @transform_3, window_bounds = array<i64: 1, 128>}, {pipeline_mode = #tpu.pipeline_mode<synchronous>, transform_indices = @transform_4, window_bounds = array<i64: 16, 32>}, {pipeline_mode = #tpu.pipeline_mode<synchronous>, transform_indices = @transform_5, window_bounds = array<i64: 128, 128>}, {pipeline_mode = #tpu.pipeline_mode<synchronous>, transform_indices = @transform_6, window_bounds = array<i64: 1, 128>}, {pipeline_mode = #tpu.pipeline_mode<synchronous>, transform_indices = @transform_7, window_bounds = array<i64: 8, 16>}, {pipeline_mode = #tpu.pipeline_mode<synchronous>, transform_indices = @transform_8, window_bounds = array<i64: 128, 128>}, {pipeline_mode = #tpu.pipeline_mode<synchronous>, transform_indices = @transform_9, window_bounds = array<i64: 1, 128>}, {pipeline_mode = #tpu.pipeline_mode<synchronous>, transform_indices = @transform_10, window_bounds = array<i64: 8, 128>}]} {
    %c0 = arith.constant 0 : index
    %c0_0 = arith.constant 0 : index
    %0 = vector.load %arg1[%c0, %c0_0] : memref<64x128xbf16, #tpu.memory_space<vmem>>, vector<64x128xbf16>
    %c0_1 = arith.constant 0 : index
    %c0_2 = arith.constant 0 : index
    %1 = vector.load %arg2[%c0_1, %c0_2] : memref<32x64xbf16, #tpu.memory_space<vmem>>, vector<32x64xbf16>
    %c0_3 = arith.constant 0 : index
    %c0_4 = arith.constant 0 : index
    %2 = vector.load %arg3[%c0_3, %c0_4] : memref<128x128xbf16, #tpu.memory_space<vmem>>, vector<128x128xbf16>
    %c0_5 = arith.constant 0 : index
    %c0_6 = arith.constant 0 : index
    %3 = vector.load %arg4[%c0_5, %c0_6] : memref<1x128xf32, #tpu.memory_space<vmem>>, vector<1x128xf32>
    %cst = arith.constant dense<0.000000e+00> : vector<32x128xf32>
    %4 = tpu.matmul %1, %0, %cst {dimension_numbers = #tpu.dot_dimension_numbers<[1], [0], [0], [1], [0, 0, 1, 1], [], []>} : vector<32x64xbf16>, vector<64x128xbf16>, vector<32x128xf32> -> vector<32x128xf32>
    %5 = arith.truncf %4 : vector<32x128xf32> to vector<32x128xbf16>
    %cst_7 = arith.constant dense<0.000000e+00> : vector<32x128xf32>
    %6 = tpu.matmul %5, %2, %cst_7 {dimension_numbers = #tpu.dot_dimension_numbers<[1], [0], [0], [1], [0, 0, 1, 1], [], []>} : vector<32x128xbf16>, vector<128x128xbf16>, vector<32x128xf32> -> vector<32x128xf32>
    %7 = vector.broadcast %3 : vector<1x128xf32> to vector<32x128xf32>
    %8 = arith.addf %6, %7 : vector<32x128xf32>
    %cst_8 = arith.constant 0.000000e+00 : f32
    %9 = vector.broadcast %cst_8 : f32 to vector<32x128xf32>
    %10 = arith.maximumf %8, %9 : vector<32x128xf32>
    %11 = arith.truncf %10 : vector<32x128xf32> to vector<32x128xbf16>
    %c0_9 = arith.constant 0 : index
    %c0_10 = arith.constant 0 : index
    %12 = vector.load %arg5[%c0_9, %c0_10] : memref<16x32xbf16, #tpu.memory_space<vmem>>, vector<16x32xbf16>
    %c0_11 = arith.constant 0 : index
    %c0_12 = arith.constant 0 : index
    %13 = vector.load %arg6[%c0_11, %c0_12] : memref<128x128xbf16, #tpu.memory_space<vmem>>, vector<128x128xbf16>
    %c0_13 = arith.constant 0 : index
    %c0_14 = arith.constant 0 : index
    %14 = vector.load %arg7[%c0_13, %c0_14] : memref<1x128xf32, #tpu.memory_space<vmem>>, vector<1x128xf32>
    %cst_15 = arith.constant dense<0.000000e+00> : vector<16x128xf32>
    %15 = tpu.matmul %12, %11, %cst_15 {dimension_numbers = #tpu.dot_dimension_numbers<[1], [0], [0], [1], [0, 0, 1, 1], [], []>} : vector<16x32xbf16>, vector<32x128xbf16>, vector<16x128xf32> -> vector<16x128xf32>
    %16 = arith.truncf %15 : vector<16x128xf32> to vector<16x128xbf16>
    %cst_16 = arith.constant dense<0.000000e+00> : vector<16x128xf32>
    %17 = tpu.matmul %16, %13, %cst_16 {dimension_numbers = #tpu.dot_dimension_numbers<[1], [0], [0], [1], [0, 0, 1, 1], [], []>} : vector<16x128xbf16>, vector<128x128xbf16>, vector<16x128xf32> -> vector<16x128xf32>
    %18 = vector.broadcast %14 : vector<1x128xf32> to vector<16x128xf32>
    %19 = arith.addf %17, %18 : vector<16x128xf32>
    %cst_17 = arith.constant 0.000000e+00 : f32
    %20 = vector.broadcast %cst_17 : f32 to vector<16x128xf32>
    %21 = arith.maximumf %19, %20 : vector<16x128xf32>
    %22 = arith.truncf %21 : vector<16x128xf32> to vector<16x128xbf16>
    %c0_18 = arith.constant 0 : index
    %c0_19 = arith.constant 0 : index
    %23 = vector.load %arg8[%c0_18, %c0_19] : memref<8x16xbf16, #tpu.memory_space<vmem>>, vector<8x16xbf16>
    %c0_20 = arith.constant 0 : index
    %c0_21 = arith.constant 0 : index
    %24 = vector.load %arg9[%c0_20, %c0_21] : memref<128x128xbf16, #tpu.memory_space<vmem>>, vector<128x128xbf16>
    %c0_22 = arith.constant 0 : index
    %c0_23 = arith.constant 0 : index
    %25 = vector.load %arg10[%c0_22, %c0_23] : memref<1x128xf32, #tpu.memory_space<vmem>>, vector<1x128xf32>
    %cst_24 = arith.constant dense<0.000000e+00> : vector<8x128xf32>
    %26 = tpu.matmul %23, %22, %cst_24 {dimension_numbers = #tpu.dot_dimension_numbers<[1], [0], [0], [1], [0, 0, 1, 1], [], []>} : vector<8x16xbf16>, vector<16x128xbf16>, vector<8x128xf32> -> vector<8x128xf32>
    %27 = arith.truncf %26 : vector<8x128xf32> to vector<8x128xbf16>
    %cst_25 = arith.constant dense<0.000000e+00> : vector<8x128xf32>
    %28 = tpu.matmul %27, %24, %cst_25 {dimension_numbers = #tpu.dot_dimension_numbers<[1], [0], [0], [1], [0, 0, 1, 1], [], []>} : vector<8x128xbf16>, vector<128x128xbf16>, vector<8x128xf32> -> vector<8x128xf32>
    %29 = vector.broadcast %25 : vector<1x128xf32> to vector<8x128xf32>
    %30 = arith.addf %28, %29 : vector<8x128xf32>
    %c0_26 = arith.constant 0 : index
    %c0_27 = arith.constant 0 : index
    %31 = vector.load %arg11[%c0_26, %c0_27] : memref<8x128xf32, #tpu.memory_space<vmem>>, vector<8x128xf32>
    tpu.vector_store %arg11[%c0_26, %c0_27], %30 {strides = array<i32>} : memref<8x128xf32, #tpu.memory_space<vmem>>, vector<8x128xf32>,
    return
  }
  func.func @transform_0(%arg0: i32) -> (i32, i32) {
    %c0_i32 = arith.constant 0 : i32
    %c0_i32_0 = arith.constant 0 : i32
    %c0_i32_1 = arith.constant 0 : i32
    return %c0_i32, %c0_i32_0 : i32, i32
  }
  func.func @transform_1(%arg0: i32) -> (i32, i32) {
    %c0_i32 = arith.constant 0 : i32
    %c0_i32_0 = arith.constant 0 : i32
    %c0_i32_1 = arith.constant 0 : i32
    return %c0_i32, %c0_i32_0 : i32, i32
  }
  func.func @transform_2(%arg0: i32) -> (i32, i32) {
    %c0_i32 = arith.constant 0 : i32
    %c0_i32_0 = arith.constant 0 : i32
    %c0_i32_1 = arith.constant 0 : i32
    return %c0_i32, %c0_i32_0 : i32, i32
  }
  func.func @transform_3(%arg0: i32) -> (i32, i32) {
    %c0_i32 = arith.constant 0 : i32
    %c0_i32_0 = arith.constant 0 : i32
    %c0_i32_1 = arith.constant 0 : i32
    return %c0_i32, %c0_i32_0 : i32, i32
  }
  func.func @transform_4(%arg0: i32) -> (i32, i32) {
    %c0_i32 = arith.constant 0 : i32
    %c0_i32_0 = arith.constant 0 : i32
    %c0_i32_1 = arith.constant 0 : i32
    return %c0_i32, %c0_i32_0 : i32, i32
  }
  func.func @transform_5(%arg0: i32) -> (i32, i32) {
    %c0_i32 = arith.constant 0 : i32
    %c0_i32_0 = arith.constant 0 : i32
    %c0_i32_1 = arith.constant 0 : i32
    return %c0_i32, %c0_i32_0 : i32, i32
  }
  func.func @transform_6(%arg0: i32) -> (i32, i32) {
    %c0_i32 = arith.constant 0 : i32
    %c0_i32_0 = arith.constant 0 : i32
    %c0_i32_1 = arith.constant 0 : i32
    return %c0_i32, %c0_i32_0 : i32, i32
  }
  func.func @transform_7(%arg0: i32) -> (i32, i32) {
    %c0_i32 = arith.constant 0 : i32
    %c0_i32_0 = arith.constant 0 : i32
    %c0_i32_1 = arith.constant 0 : i32
    return %c0_i32, %c0_i32_0 : i32, i32
  }
  func.func @transform_8(%arg0: i32) -> (i32, i32) {
    %c0_i32 = arith.constant 0 : i32
    %c0_i32_0 = arith.constant 0 : i32
    %c0_i32_1 = arith.constant 0 : i32
    return %c0_i32, %c0_i32_0 : i32, i32
  }
  func.func @transform_9(%arg0: i32) -> (i32, i32) {
    %c0_i32 = arith.constant 0 : i32
    %c0_i32_0 = arith.constant 0 : i32
    %c0_i32_1 = arith.constant 0 : i32
    return %c0_i32, %c0_i32_0 : i32, i32
  }
  func.func @transform_10(%arg0: i32) -> (i32, i32) {
    %c0_i32 = arith.constant 0 : i32
    %c0_i32_0 = arith.constant 0 : i32
    %c0_i32_1 = arith.constant 0 : i32
    return %c0_i32, %c0_i32_0 : i32, i32
  }
}

</mosaic_0001>

<llo_original>
// kernel: tpu_custom_call.1
$region0: #{tpu_custom_call.1}
  #allocation0 [shape = 'u32[]', space=smem, size = 0x4, offset = 0x4, fixed_abs, tag = 'smem constant byte address 0x4 - core index']
  #allocation1 [shape = 'u32[144,128]{1,0:T(1,128)}', space=vmem, size = 0x12000, scoped, tag = 'internal scratch']
  %s0 = inlined_call_operand.hbm [shape: bf16[64,128], index: 0, kind: input, shape index: {}]
  %s1 = inlined_call_operand.hbm [shape: bf16[32,64], index: 1, kind: input, shape index: {}]
  %s2 = inlined_call_operand.hbm [shape: bf16[128,128], index: 2, kind: input, shape index: {}]
  %s3 = inlined_call_operand.vmem [shape: f32[1,128], index: 3, kind: input, shape index: {}]
  %s4 = inlined_call_operand.vmem [shape: bf16[16,32], index: 4, kind: input, shape index: {}]
  %s5 = inlined_call_operand.hbm [shape: bf16[128,128], index: 5, kind: input, shape index: {}]
  %s6 = inlined_call_operand.vmem [shape: f32[1,128], index: 6, kind: input, shape index: {}]
  %s7 = inlined_call_operand.vmem [shape: bf16[8,16], index: 7, kind: input, shape index: {}]
  %s8 = inlined_call_operand.hbm [shape: bf16[128,128], index: 8, kind: input, shape index: {}]
  %s9 = inlined_call_operand.vmem [shape: f32[1,128], index: 9, kind: input, shape index: {}]
  %s10 = inlined_call_operand.hbm [shape: f32[8,128], index: 10, kind: output, shape index: {}]
  %s11 = sld [smem:[#allocation0]]
  $region70: #{tpu_custom_call.1} parent=0
    _
  %s13 = ssub.s32 1, %s11
  %s14 = scalar_select 0, %s13, %s11
  $region1: #{tpu_custom_call.1} parent=0
    #allocation2 [shape = 'u8[16384]{0}', space=vmem, size = 0x4000, scoped, tag = 'input window, operand 0, single buffered']
    #allocation3 [shape = 's32[1]{0}', space=sflag, size = 0x4, scoped, tag = 'scoped memory for tpu_custom_call.1']
    #allocation4 [shape = 's32[1]{0}', space=sflag, size = 0x4, scoped, tag = 'scoped memory for tpu_custom_call.1']
    #allocation5 [shape = 'u8[8192]{0}', space=vmem, size = 0x2000, scoped, tag = 'input window, operand 1, single buffered']
    #allocation6 [shape = 's32[1]{0}', space=sflag, size = 0x4, scoped, tag = 'scoped memory for tpu_custom_call.1']
    #allocation7 [shape = 'u8[32768]{0}', space=vmem, size = 0x8000, scoped, tag = 'input window, operand 2, single buffered']
    #allocation8 [shape = 'u8[32768]{0}', space=vmem, size = 0x8000, scoped, tag = 'input window, operand 5, single buffered']
    #allocation9 [shape = 's32[1]{0}', space=sflag, size = 0x4, scoped, tag = 'scoped memory for tpu_custom_call.1']
    #allocation10 [shape = 'u8[32768]{0}', space=vmem, size = 0x8000, scoped, tag = 'input window, operand 8, single buffered']
    #allocation11 [shape = 'u8[4096]{0}', space=vmem, size = 0x1000, scoped, tag = 'output window, operand 0, single buffered']
    %15 = vsyncpa [#allocation3], 0
    %16 = vsyncpa [#allocation6], 0
    %17 = vsyncpa [#allocation9], 0
    %18 = vsyncpa [#allocation4], 0
    // Predicated region
    $region2: #{tpu_custom_call.1} parent=1 // pred_check
      _
    $region3: #{tpu_custom_call.1} parent=1 // pred_check_branch
      %20 = sbr.rel (0) target = $region5
    $region4: #{tpu_custom_call.1} parent=1 // pred_region
      %s22 = ssub.s32 512, 512
      %23 = vsyncadd [#allocation3], %s22
      %s24 = sshll.u32 [#allocation2], 4
      %s25 = int_to_ptr.vmem [resolvable:$true] %s24
      %30 = dma.hbm_to_vmem [thread:$0]  %s0, 512, %s25, [#allocation3], 64, 64, 4
    $region5: #{tpu_custom_call.1} parent=1 // pred_fallthru
      _
    // Predicated region
    $region6: #{tpu_custom_call.1} parent=1 // pred_check
      _
    $region7: #{tpu_custom_call.1} parent=1 // pred_check_branch
      %32 = sbr.rel (0) target = $region9
    $region8: #{tpu_custom_call.1} parent=1 // pred_region
      %s34 = ssub.s32 256, 256
      %35 = vsyncadd [#allocation6], %s34
      %s36 = sshll.u32 [#allocation5], 4
      %s37 = int_to_ptr.vmem [resolvable:$true] %s36
      %42 = dma.hbm_to_vmem [thread:$0]  %s1, 256, %s37, [#allocation6], 64, 64, 4
    $region9: #{tpu_custom_call.1} parent=1 // pred_fallthru
      _
    // Predicated region
    $region10: #{tpu_custom_call.1} parent=1 // pred_check
      _
    $region11: #{tpu_custom_call.1} parent=1 // pred_check_branch
      %44 = sbr.rel (0) target = $region13
    $region12: #{tpu_custom_call.1} parent=1 // pred_region
      %s46 = ssub.s32 1024, 1024
      %47 = vsyncadd [#allocation6], %s46
      %s48 = sshll.u32 [#allocation7], 4
      %s49 = int_to_ptr.vmem [resolvable:$true] %s48
      %54 = dma.hbm_to_vmem [thread:$0]  %s2, 1024, %s49, [#allocation6], 64, 64, 4
    $region13: #{tpu_custom_call.1} parent=1 // pred_fallthru
      _
    // Predicated region
    $region14: #{tpu_custom_call.1} parent=1 // pred_check
      _
    $region15: #{tpu_custom_call.1} parent=1 // pred_check_branch
      %56 = sbr.rel (0) target = $region17
    $region16: #{tpu_custom_call.1} parent=1 // pred_region
      _
    $region17: #{tpu_custom_call.1} parent=1 // pred_fallthru
      _
    // Predicated region
    $region18: #{tpu_custom_call.1} parent=1 // pred_check
      _
    $region19: #{tpu_custom_call.1} parent=1 // pred_check_branch
      %58 = sbr.rel (0) target = $region21
    $region20: #{tpu_custom_call.1} parent=1 // pred_region
      _
    $region21: #{tpu_custom_call.1} parent=1 // pred_fallthru
      _
    // Predicated region
    $region22: #{tpu_custom_call.1} parent=1 // pred_check
      _
    $region23: #{tpu_custom_call.1} parent=1 // pred_check_branch
      %60 = sbr.rel (0) target = $region25
    $region24: #{tpu_custom_call.1} parent=1 // pred_region
      %s62 = ssub.s32 1024, 1024
      %63 = vsyncadd [#allocation9], %s62
      %s64 = sshll.u32 [#allocation8], 4
      %s65 = int_to_ptr.vmem [resolvable:$true] %s64
      %70 = dma.hbm_to_vmem [thread:$0]  %s5, 1024, %s65, [#allocation9], 64, 64, 4
    $region25: #{tpu_custom_call.1} parent=1 // pred_fallthru
      _
    // Predicated region
    $region26: #{tpu_custom_call.1} parent=1 // pred_check
      _
    $region27: #{tpu_custom_call.1} parent=1 // pred_check_branch
      %72 = sbr.rel (0) target = $region29
    $region28: #{tpu_custom_call.1} parent=1 // pred_region
      _
    $region29: #{tpu_custom_call.1} parent=1 // pred_fallthru
      _
    // Predicated region
    $region30: #{tpu_custom_call.1} parent=1 // pred_check
      _
    $region31: #{tpu_custom_call.1} parent=1 // pred_check_branch
      %74 = sbr.rel (0) target = $region33
    $region32: #{tpu_custom_call.1} parent=1 // pred_region
      _
    $region33: #{tpu_custom_call.1} parent=1 // pred_fallthru
      _
    // Predicated region
    $region34: #{tpu_custom_call.1} parent=1 // pred_check
      _
    $region35: #{tpu_custom_call.1} parent=1 // pred_check_branch
      %76 = sbr.rel (0) target = $region37
    $region36: #{tpu_custom_call.1} parent=1 // pred_region
      %s78 = ssub.s32 1024, 1024
      %79 = vsyncadd [#allocation9], %s78
      %s80 = sshll.u32 [#allocation10], 4
      %s81 = int_to_ptr.vmem [resolvable:$true] %s80
      %86 = dma.hbm_to_vmem [thread:$0]  %s8, 1024, %s81, [#allocation9], 64, 64, 4
    $region37: #{tpu_custom_call.1} parent=1 // pred_fallthru
      _
    // Predicated region
    $region38: #{tpu_custom_call.1} parent=1 // pred_check
      _
    $region39: #{tpu_custom_call.1} parent=1 // pred_check_branch
      %88 = sbr.rel (0) target = $region41
    $region40: #{tpu_custom_call.1} parent=1 // pred_region
      _
    $region41: #{tpu_custom_call.1} parent=1 // pred_fallthru
      _
    // Predicated region
    $region42: #{tpu_custom_call.1} parent=1 // pred_check
      _
    $region43: #{tpu_custom_call.1} parent=1 // pred_check_branch
      %90 = sbr.rel (0) target = $region45
    $region44: #{tpu_custom_call.1} parent=1 // pred_region
      %91 = dma.done [#allocation3], 512
    $region45: #{tpu_custom_call.1} parent=1 // pred_fallthru
      _
    // Predicated region
    $region46: #{tpu_custom_call.1} parent=1 // pred_check
      _
    $region47: #{tpu_custom_call.1} parent=1 // pred_check_branch
      %93 = sbr.rel (0) target = $region49
    $region48: #{tpu_custom_call.1} parent=1 // pred_region
      %94 = dma.done [#allocation6], 256
    $region49: #{tpu_custom_call.1} parent=1 // pred_fallthru
      _
    // Predicated region
    $region50: #{tpu_custom_call.1} parent=1 // pred_check
      _
    $region51: #{tpu_custom_call.1} parent=1 // pred_check_branch
      %96 = sbr.rel (0) target = $region53
    $region52: #{tpu_custom_call.1} parent=1 // pred_region
      %97 = dma.done [#allocation6], 1024
    $region53: #{tpu_custom_call.1} parent=1 // pred_fallthru
      _
    // Predicated region
    $region54: #{tpu_custom_call.1} parent=1 // pred_check
      _
    $region55: #{tpu_custom_call.1} parent=1 // pred_check_branch
      %99 = sbr.rel (0) target = $region57
    $region56: #{tpu_custom_call.1} parent=1 // pred_region
      %100 = dma.done [#allocation9], 1024
    $region57: #{tpu_custom_call.1} parent=1 // pred_fallthru
      _
    // Predicated region
    $region58: #{tpu_custom_call.1} parent=1 // pred_check
      _
    $region59: #{tpu_custom_call.1} parent=1 // pred_check_branch
      %102 = sbr.rel (0) target = $region61
    $region60: #{tpu_custom_call.1} parent=1 // pred_region
      %103 = dma.done [#allocation9], 1024
    $region61: #{tpu_custom_call.1} parent=1 // pred_fallthru
      _
    %v105 = vld [vmem:[#allocation2] sm:$0xf]
    %v106 = vld [vmem:[#allocation2 + $0x4] sm:$0xf]
    %v107 = vld [vmem:[#allocation2 + $0x8] sm:$0xf]
    %v108 = vld [vmem:[#allocation2 + $0xc] sm:$0xf]
    %v109 = vld [vmem:[#allocation2 + $0x10] sm:$0xf]
    %v110 = vld [vmem:[#allocation2 + $0x14] sm:$0xf]
    %v111 = vld [vmem:[#allocation2 + $0x18] sm:$0xf]
    %v112 = vld [vmem:[#allocation2 + $0x1c] sm:$0xf]
    %v113 = vld [vmem:[#allocation5] sm:$0xf]
    %v114 = vld [vmem:[#allocation5 + $0x4] sm:$0xf]
    %v115 = vld [vmem:[#allocation5 + $0x8] sm:$0xf]
    %v116 = vld [vmem:[#allocation5 + $0xc] sm:$0xf]
    %v117 = vld [vmem:[#allocation7] sm:$0xf]
    %v118 = vld [vmem:[#allocation7 + $0x4] sm:$0xf]
    %v119 = vld [vmem:[#allocation7 + $0x8] sm:$0xf]
    %v120 = vld [vmem:[#allocation7 + $0xc] sm:$0xf]
    %v121 = vld [vmem:[#allocation7 + $0x10] sm:$0xf]
    %v122 = vld [vmem:[#allocation7 + $0x14] sm:$0xf]
    %v123 = vld [vmem:[#allocation7 + $0x18] sm:$0xf]
    %v124 = vld [vmem:[#allocation7 + $0x1c] sm:$0xf]
    %v125 = vld [vmem:[#allocation7 + $0x20] sm:$0xf]
    %v126 = vld [vmem:[#allocation7 + $0x24] sm:$0xf]
    %v127 = vld [vmem:[#allocation7 + $0x28] sm:$0xf]
    %v128 = vld [vmem:[#allocation7 + $0x2c] sm:$0xf]
    %v129 = vld [vmem:[#allocation7 + $0x30] sm:$0xf]
    %v130 = vld [vmem:[#allocation7 + $0x34] sm:$0xf]
    %v131 = vld [vmem:[#allocation7 + $0x38] sm:$0xf]
    %v132 = vld [vmem:[#allocation7 + $0x3c] sm:$0xf]
    %v133 = vld [vmem:[%s3] sm:$0x1]
    %v138 = vunpack.c.l.b16 %v113
    %v139 = vunpack.c.l.b16 %v114
    %v140 = vunpack.c.l.b16 %v115
    %v141 = vunpack.c.l.b16 %v116
    %v142 = vpack.c.b16 %v139, %v138
    %v143 = vpack.c.b16 %v141, %v140
    %v152 = vunpack.c.l.b16 %v105
    %v153 = vunpack.c.l.b16 %v106
    %v154 = vunpack.c.l.b16 %v107
    %v155 = vunpack.c.l.b16 %v108
    %v156 = vunpack.c.l.b16 %v109
    %v157 = vunpack.c.l.b16 %v110
    %v158 = vunpack.c.l.b16 %v111
    %v159 = vunpack.c.l.b16 %v112
    %v160 = vpack.c.b16 %v153, %v152
    %v161 = vpack.c.b16 %v155, %v154
    %v162 = vpack.c.b16 %v157, %v156
    %v163 = vpack.c.b16 %v159, %v158
    %vm168 = vcmask 523264
    %v170 = vsel %vm168, %v142, 0
    %v173 = vsel %vm168, %v143, 0
    %175 = vmatprep.subr.bf16.mxu0 0
    %176 = vmatpush1.bf16.msra.mxu0 %v160
    %177 = vmatprep.subr.bf16.mxu0 0
    %178 = vmatpush1.bf16.msra.mxu0 %v161
    %179 = vmatprep.subr.bf16.mxu0 0
    %180 = vmatpush1.bf16.msra.mxu0 %v162
    %181 = vmatprep.subr.bf16.mxu0 0
    %182 = vmatpush1.bf16.msra.mxu0 %v163
    %183 = vmatprep.subr.bf16.mxu0 0
    %184 = vmatpush1.bf16.msra.mxu0 0
    %185 = vmatprep.subr.bf16.mxu0 0
    %186 = vmatpush1.bf16.msra.mxu0 0
    %187 = vmatprep.subr.bf16.mxu0 0
    %188 = vmatpush1.bf16.msra.mxu0 0
    %189 = vmatprep.subr.bf16.mxu0 0
    %190 = vmatpush1.bf16.msra.mxu0 0
    %191 = vmatprep.subr.bf16.mxu0 0
    %192 = vmatpush1.bf16.msra.mxu0 0
    %193 = vmatprep.subr.bf16.mxu0 0
    %194 = vmatpush1.bf16.msra.mxu0 0
    %195 = vmatprep.subr.bf16.mxu0 0
    %196 = vmatpush1.bf16.msra.mxu0 0
    %197 = vmatprep.subr.bf16.mxu0 0
    %198 = vmatpush1.bf16.msra.mxu0 0
    %199 = vmatprep.subr.bf16.mxu0 0
    %200 = vmatpush1.bf16.msra.mxu0 0
    %201 = vmatprep.subr.bf16.mxu0 0
    %202 = vmatpush1.bf16.msra.mxu0 0
    %203 = vmatprep.subr.bf16.mxu0 0
    %204 = vmatpush1.bf16.msra.mxu0 0
    %205 = vmatprep.subr.bf16.mxu0 0
    %206 = vmatpush1.bf16.msra.mxu0 0
    %207 = vmatprep.mubr.bf16.mxu0 0
    %208 = vmatmul.mubr.bf16.gmra.mrb[0].mxu0 %v170
    %v209 = vpop.f32.mrb[0].mxu0
    %v210 = vadd.f32 0.0, %v209
    %v211 = vpop.f32.mrb[0].mxu0
    %v212 = vpop.f32.mrb[0].mxu0
    %v213 = vadd.f32 0.0, %v212
    %v214 = vpop.f32.mrb[0].mxu0
    %215 = vmatprep.mubr.bf16.mxu0 0
    %216 = vmatmul.mubr.bf16.gmra.mrb[0].mxu0 %v173
    %v217 = vpop.f32.mrb[0].mxu0
    %v218 = vadd.f32 0.0, %v217
    %v219 = vpop.f32.mrb[0].mxu0
    %v220 = vpop.f32.mrb[0].mxu0
    %v221 = vadd.f32 0.0, %v220
    %v222 = vpop.f32.mrb[0].mxu0
    %223 = vdwg.mxu0
    %v224 = vpack.c.bf16 %v213, %v210
    %v225 = vpack.c.bf16 %v221, %v218
    %v227 = vlaneseq
    %v228 = vshrl.u32 %v227, 7
    %v229 = vsub.s32 0, %v228
    %v230 = vrot.slane %v133, %v229
    %v248 = vunpack.c.l.b16 %v117
    %v249 = vunpack.c.l.b16 %v118
    %v250 = vunpack.c.l.b16 %v119
    %v251 = vunpack.c.l.b16 %v120
    %v252 = vunpack.c.l.b16 %v121
    %v253 = vunpack.c.l.b16 %v122
    %v254 = vunpack.c.l.b16 %v123
    %v255 = vunpack.c.l.b16 %v124
    %v256 = vunpack.c.l.b16 %v125
    %v257 = vunpack.c.l.b16 %v126
    %v258 = vunpack.c.l.b16 %v127
    %v259 = vunpack.c.l.b16 %v128
    %v260 = vunpack.c.l.b16 %v129
    %v261 = vunpack.c.l.b16 %v130
    %v262 = vunpack.c.l.b16 %v131
    %v263 = vunpack.c.l.b16 %v132
    %v264 = vpack.c.b16 %v249, %v248
    %v265 = vpack.c.b16 %v251, %v250
    %v266 = vpack.c.b16 %v253, %v252
    %v267 = vpack.c.b16 %v255, %v254
    %v268 = vpack.c.b16 %v257, %v256
    %v269 = vpack.c.b16 %v259, %v258
    %v270 = vpack.c.b16 %v261, %v260
    %v271 = vpack.c.b16 %v263, %v262
    %280 = vmatprep.subr.bf16.mxu0 0
    %281 = vmatpush1.bf16.msra.mxu0 %v264
    %282 = vmatprep.subr.bf16.mxu0 0
    %283 = vmatpush1.bf16.msra.mxu0 %v265
    %284 = vmatprep.subr.bf16.mxu0 0
    %285 = vmatpush1.bf16.msra.mxu0 %v266
    %286 = vmatprep.subr.bf16.mxu0 0
    %287 = vmatpush1.bf16.msra.mxu0 %v267
    %288 = vmatprep.subr.bf16.mxu0 0
    %289 = vmatpush1.bf16.msra.mxu0 %v268
    %290 = vmatprep.subr.bf16.mxu0 0
    %291 = vmatpush1.bf16.msra.mxu0 %v269
    %292 = vmatprep.subr.bf16.mxu0 0
    %293 = vmatpush1.bf16.msra.mxu0 %v270
    %294 = vmatprep.subr.bf16.mxu0 0
    %295 = vmatpush1.bf16.msra.mxu0 %v271
    %296 = vmatprep.subr.bf16.mxu0 0
    %297 = vmatpush1.bf16.msra.mxu0 0
    %298 = vmatprep.subr.bf16.mxu0 0
    %299 = vmatpush1.bf16.msra.mxu0 0
    %300 = vmatprep.subr.bf16.mxu0 0
    %301 = vmatpush1.bf16.msra.mxu0 0
    %302 = vmatprep.subr.bf16.mxu0 0
    %303 = vmatpush1.bf16.msra.mxu0 0
    %304 = vmatprep.subr.bf16.mxu0 0
    %305 = vmatpush1.bf16.msra.mxu0 0
    %306 = vmatprep.subr.bf16.mxu0 0
    %307 = vmatpush1.bf16.msra.mxu0 0
    %308 = vmatprep.subr.bf16.mxu0 0
    %309 = vmatpush1.bf16.msra.mxu0 0
    %310 = vmatprep.subr.bf16.mxu0 0
    %311 = vmatpush1.bf16.msra.mxu0 0
    %312 = vmatprep.mubr.bf16.mxu0 0
    %313 = vmatmul.mubr.bf16.gmra.mrb[0].mxu0 %v224
    %v314 = vpop.f32.mrb[0].mxu0
    %v315 = vadd.f32 %v230, %v314
    %v316 = vpop.f32.mrb[0].mxu0
    %v317 = vpop.f32.mrb[0].mxu0
    %v318 = vadd.f32 %v230, %v317
    %v319 = vpop.f32.mrb[0].mxu0
    %320 = vmatprep.mubr.bf16.mxu0 0
    %321 = vmatmul.mubr.bf16.gmra.mrb[0].mxu0 %v225
    %v322 = vpop.f32.mrb[0].mxu0
    %v323 = vadd.f32 %v230, %v322
    %v324 = vpop.f32.mrb[0].mxu0
    %v325 = vpop.f32.mrb[0].mxu0
    %v326 = vadd.f32 %v230, %v325
    %v327 = vpop.f32.mrb[0].mxu0
    %328 = vdwg.mxu0
    %v329 = vmax.f32 %v315, 0.0
    %v330 = vmax.f32 %v318, 0.0
    %v331 = vmax.f32 %v323, 0.0
    %v332 = vmax.f32 %v326, 0.0
    %v333 = vpack.c.bf16 %v330, %v329
    %v334 = vpack.c.bf16 %v332, %v331
    %v335 = vld [vmem:[%s4] sm:$0xf]
    %v336 = vld [vmem:[%s4 + $0x4] sm:$0xf]
    %v337 = vld [vmem:[#allocation8] sm:$0xf]
    %v338 = vld [vmem:[#allocation8 + $0x4] sm:$0xf]
    %v339 = vld [vmem:[#allocation8 + $0x8] sm:$0xf]
    %v340 = vld [vmem:[#allocation8 + $0xc] sm:$0xf]
    %v341 = vld [vmem:[#allocation8 + $0x10] sm:$0xf]
    %v342 = vld [vmem:[#allocation8 + $0x14] sm:$0xf]
    %v343 = vld [vmem:[#allocation8 + $0x18] sm:$0xf]
    %v344 = vld [vmem:[#allocation8 + $0x1c] sm:$0xf]
    %v345 = vld [vmem:[#allocation8 + $0x20] sm:$0xf]
    %v346 = vld [vmem:[#allocation8 + $0x24] sm:$0xf]
    %v347 = vld [vmem:[#allocation8 + $0x28] sm:$0xf]
    %v348 = vld [vmem:[#allocation8 + $0x2c] sm:$0xf]
    %v349 = vld [vmem:[#allocation8 + $0x30] sm:$0xf]
    %v350 = vld [vmem:[#allocation8 + $0x34] sm:$0xf]
    %v351 = vld [vmem:[#allocation8 + $0x38] sm:$0xf]
    %v352 = vld [vmem:[#allocation8 + $0x3c] sm:$0xf]
    %v353 = vld [vmem:[%s6] sm:$0x1]
    %v356 = vunpack.c.l.b16 %v335
    %v357 = vunpack.c.l.b16 %v336
    %v358 = vpack.c.b16 %v357, %v356
    %vm359 = vcmask 261120
    %v361 = vsel %vm359, %v358, 0
    %363 = vmatprep.subr.bf16.mxu0 0
    %364 = vmatpush1.bf16.msra.mxu0 %v333
    %365 = vmatprep.subr.bf16.mxu0 0
    %366 = vmatpush1.bf16.msra.mxu0 %v334
    %367 = vmatprep.subr.bf16.mxu0 0
    %368 = vmatpush1.bf16.msra.mxu0 0
    %369 = vmatprep.subr.bf16.mxu0 0
    %370 = vmatpush1.bf16.msra.mxu0 0
    %371 = vmatprep.subr.bf16.mxu0 0
    %372 = vmatpush1.bf16.msra.mxu0 0
    %373 = vmatprep.subr.bf16.mxu0 0
    %374 = vmatpush1.bf16.msra.mxu0 0
    %375 = vmatprep.subr.bf16.mxu0 0
    %376 = vmatpush1.bf16.msra.mxu0 0
    %377 = vmatprep.subr.bf16.mxu0 0
    %378 = vmatpush1.bf16.msra.mxu0 0
    %379 = vmatprep.subr.bf16.mxu0 0
    %380 = vmatpush1.bf16.msra.mxu0 0
    %381 = vmatprep.subr.bf16.mxu0 0
    %382 = vmatpush1.bf16.msra.mxu0 0
    %383 = vmatprep.subr.bf16.mxu0 0
    %384 = vmatpush1.bf16.msra.mxu0 0
    %385 = vmatprep.subr.bf16.mxu0 0
    %386 = vmatpush1.bf16.msra.mxu0 0
    %387 = vmatprep.subr.bf16.mxu0 0
    %388 = vmatpush1.bf16.msra.mxu0 0
    %389 = vmatprep.subr.bf16.mxu0 0
    %390 = vmatpush1.bf16.msra.mxu0 0
    %391 = vmatprep.subr.bf16.mxu0 0
    %392 = vmatpush1.bf16.msra.mxu0 0
    %393 = vmatprep.subr.bf16.mxu0 0
    %394 = vmatpush1.bf16.msra.mxu0 0
    %395 = vmatprep.mubr.bf16.mxu0 0
    %396 = vmatmul.mubr.bf16.gmra.mrb[0].mxu0 %v361
    %v397 = vpop.f32.mrb[0].mxu0
    %v398 = vadd.f32 0.0, %v397
    %v399 = vpop.f32.mrb[0].mxu0
    %v400 = vpop.f32.mrb[0].mxu0
    %v401 = vadd.f32 0.0, %v400
    %v402 = vpop.f32.mrb[0].mxu0
    %403 = vdwg.mxu0
    %v404 = vpack.c.bf16 %v401, %v398
    %v406 = vlaneseq
    %v407 = vshrl.u32 %v406, 7
    %v408 = vsub.s32 0, %v407
    %v409 = vrot.slane %v353, %v408
    %v427 = vunpack.c.l.b16 %v337
    %v428 = vunpack.c.l.b16 %v338
    %v429 = vunpack.c.l.b16 %v339
    %v430 = vunpack.c.l.b16 %v340
    %v431 = vunpack.c.l.b16 %v341
    %v432 = vunpack.c.l.b16 %v342
    %v433 = vunpack.c.l.b16 %v343
    %v434 = vunpack.c.l.b16 %v344
    %v435 = vunpack.c.l.b16 %v345
    %v436 = vunpack.c.l.b16 %v346
    %v437 = vunpack.c.l.b16 %v347
    %v438 = vunpack.c.l.b16 %v348
    %v439 = vunpack.c.l.b16 %v349
    %v440 = vunpack.c.l.b16 %v350
    %v441 = vunpack.c.l.b16 %v351
    %v442 = vunpack.c.l.b16 %v352
    %v443 = vpack.c.b16 %v428, %v427
    %v444 = vpack.c.b16 %v430, %v429
    %v445 = vpack.c.b16 %v432, %v431
    %v446 = vpack.c.b16 %v434, %v433
    %v447 = vpack.c.b16 %v436, %v435
    %v448 = vpack.c.b16 %v438, %v437
    %v449 = vpack.c.b16 %v440, %v439
    %v450 = vpack.c.b16 %v442, %v441
    %459 = vmatprep.subr.bf16.mxu0 0
    %460 = vmatpush1.bf16.msra.mxu0 %v443
    %461 = vmatprep.subr.bf16.mxu0 0
    %462 = vmatpush1.bf16.msra.mxu0 %v444
    %463 = vmatprep.subr.bf16.mxu0 0
    %464 = vmatpush1.bf16.msra.mxu0 %v445
    %465 = vmatprep.subr.bf16.mxu0 0
    %466 = vmatpush1.bf16.msra.mxu0 %v446
    %467 = vmatprep.subr.bf16.mxu0 0
    %468 = vmatpush1.bf16.msra.mxu0 %v447
    %469 = vmatprep.subr.bf16.mxu0 0
    %470 = vmatpush1.bf16.msra.mxu0 %v448
    %471 = vmatprep.subr.bf16.mxu0 0
    %472 = vmatpush1.bf16.msra.mxu0 %v449
    %473 = vmatprep.subr.bf16.mxu0 0
    %474 = vmatpush1.bf16.msra.mxu0 %v450
    %475 = vmatprep.subr.bf16.mxu0 0
    %476 = vmatpush1.bf16.msra.mxu0 0
    %477 = vmatprep.subr.bf16.mxu0 0
    %478 = vmatpush1.bf16.msra.mxu0 0
    %479 = vmatprep.subr.bf16.mxu0 0
    %480 = vmatpush1.bf16.msra.mxu0 0
    %481 = vmatprep.subr.bf16.mxu0 0
    %482 = vmatpush1.bf16.msra.mxu0 0
    %483 = vmatprep.subr.bf16.mxu0 0
    %484 = vmatpush1.bf16.msra.mxu0 0
    %485 = vmatprep.subr.bf16.mxu0 0
    %486 = vmatpush1.bf16.msra.mxu0 0
    %487 = vmatprep.subr.bf16.mxu0 0
    %488 = vmatpush1.bf16.msra.mxu0 0
    %489 = vmatprep.subr.bf16.mxu0 0
    %490 = vmatpush1.bf16.msra.mxu0 0
    %491 = vmatprep.mubr.bf16.mxu0 0
    %492 = vmatmul.mubr.bf16.gmra.mrb[0].mxu0 %v404
    %v493 = vpop.f32.mrb[0].mxu0
    %v494 = vadd.f32 %v409, %v493
    %v495 = vpop.f32.mrb[0].mxu0
    %v496 = vpop.f32.mrb[0].mxu0
    %v497 = vadd.f32 %v409, %v496
    %v498 = vpop.f32.mrb[0].mxu0
    %499 = vdwg.mxu0
    %v500 = vmax.f32 %v494, 0.0
    %v501 = vmax.f32 %v497, 0.0
    %v502 = vpack.c.bf16 %v501, %v500
    %v503 = vld [vmem:[%s7] sm:$0xf]
    %v504 = vld [vmem:[#allocation10] sm:$0xf]
    %v505 = vld [vmem:[#allocation10 + $0x4] sm:$0xf]
    %v506 = vld [vmem:[#allocation10 + $0x8] sm:$0xf]
    %v507 = vld [vmem:[#allocation10 + $0xc] sm:$0xf]
    %v508 = vld [vmem:[#allocation10 + $0x10] sm:$0xf]
    %v509 = vld [vmem:[#allocation10 + $0x14] sm:$0xf]
    %v510 = vld [vmem:[#allocation10 + $0x18] sm:$0xf]
    %v511 = vld [vmem:[#allocation10 + $0x1c] sm:$0xf]
    %v512 = vld [vmem:[#allocation10 + $0x20] sm:$0xf]
    %v513 = vld [vmem:[#allocation10 + $0x24] sm:$0xf]
    %v514 = vld [vmem:[#allocation10 + $0x28] sm:$0xf]
    %v515 = vld [vmem:[#allocation10 + $0x2c] sm:$0xf]
    %v516 = vld [vmem:[#allocation10 + $0x30] sm:$0xf]
    %v517 = vld [vmem:[#allocation10 + $0x34] sm:$0xf]
    %v518 = vld [vmem:[#allocation10 + $0x38] sm:$0xf]
    %v519 = vld [vmem:[#allocation10 + $0x3c] sm:$0xf]
    %v520 = vld [vmem:[%s9] sm:$0x1]
    %vm521 = vcmask 130048
    %v523 = vsel %vm521, %v503, 0
    %525 = vmatprep.subr.bf16.mxu0 0
    %526 = vmatpush1.bf16.msra.mxu0 %v502
    %527 = vmatprep.subr.bf16.mxu0 0
    %528 = vmatpush1.bf16.msra.mxu0 0
    %529 = vmatprep.subr.bf16.mxu0 0
    %530 = vmatpush1.bf16.msra.mxu0 0
    %531 = vmatprep.subr.bf16.mxu0 0
    %532 = vmatpush1.bf16.msra.mxu0 0
    %533 = vmatprep.subr.bf16.mxu0 0
    %534 = vmatpush1.bf16.msra.mxu0 0
    %535 = vmatprep.subr.bf16.mxu0 0
    %536 = vmatpush1.bf16.msra.mxu0 0
    %537 = vmatprep.subr.bf16.mxu0 0
    %538 = vmatpush1.bf16.msra.mxu0 0
    %539 = vmatprep.subr.bf16.mxu0 0
    %540 = vmatpush1.bf16.msra.mxu0 0
    %541 = vmatprep.subr.bf16.mxu0 0
    %542 = vmatpush1.bf16.msra.mxu0 0
    %543 = vmatprep.subr.bf16.mxu0 0
    %544 = vmatpush1.bf16.msra.mxu0 0
    %545 = vmatprep.subr.bf16.mxu0 0
    %546 = vmatpush1.bf16.msra.mxu0 0
    %547 = vmatprep.subr.bf16.mxu0 0
    %548 = vmatpush1.bf16.msra.mxu0 0
    %549 = vmatprep.subr.bf16.mxu0 0
    %550 = vmatpush1.bf16.msra.mxu0 0
    %551 = vmatprep.subr.bf16.mxu0 0
    %552 = vmatpush1.bf16.msra.mxu0 0
    %553 = vmatprep.subr.bf16.mxu0 0
    %554 = vmatpush1.bf16.msra.mxu0 0
    %555 = vmatprep.subr.bf16.mxu0 0
    %556 = vmatpush1.bf16.msra.mxu0 0
    %557 = vmatprep.mubr.bf16.mxu0 0
    %558 = vmatmul.mubr.bf16.gmra.mrb[0].mxu0 %v523
    %v559 = vpop.f32.mrb[0].mxu0
    %v560 = vadd.f32 0.0, %v559
    %v561 = vpop.f32.mrb[0].mxu0
    %v562 = vpop.f32.mrb[0].mxu0
    %v563 = vpop.f32.mrb[0].mxu0
    %564 = vdwg.mxu0
    %v565 = vpack.c.bf16 %v560, %v560
    %v567 = vlaneseq
    %v568 = vshrl.u32 %v567, 7
    %v569 = vsub.s32 0, %v568
    %v570 = vrot.slane %v520, %v569
    %v588 = vunpack.c.l.b16 %v504
    %v589 = vunpack.c.l.b16 %v505
    %v590 = vunpack.c.l.b16 %v506
    %v591 = vunpack.c.l.b16 %v507
    %v592 = vunpack.c.l.b16 %v508
    %v593 = vunpack.c.l.b16 %v509
    %v594 = vunpack.c.l.b16 %v510
    %v595 = vunpack.c.l.b16 %v511
    %v596 = vunpack.c.l.b16 %v512
    %v597 = vunpack.c.l.b16 %v513
    %v598 = vunpack.c.l.b16 %v514
    %v599 = vunpack.c.l.b16 %v515
    %v600 = vunpack.c.l.b16 %v516
    %v601 = vunpack.c.l.b16 %v517
    %v602 = vunpack.c.l.b16 %v518
    %v603 = vunpack.c.l.b16 %v519
    %v604 = vpack.c.b16 %v589, %v588
    %v605 = vpack.c.b16 %v591, %v590
    %v606 = vpack.c.b16 %v593, %v592
    %v607 = vpack.c.b16 %v595, %v594
    %v608 = vpack.c.b16 %v597, %v596
    %v609 = vpack.c.b16 %v599, %v598
    %v610 = vpack.c.b16 %v601, %v600
    %v611 = vpack.c.b16 %v603, %v602
    %620 = vmatprep.subr.bf16.mxu0 0
    %621 = vmatpush1.bf16.msra.mxu0 %v604
    %622 = vmatprep.subr.bf16.mxu0 0
    %623 = vmatpush1.bf16.msra.mxu0 %v605
    %624 = vmatprep.subr.bf16.mxu0 0
    %625 = vmatpush1.bf16.msra.mxu0 %v606
    %626 = vmatprep.subr.bf16.mxu0 0
    %627 = vmatpush1.bf16.msra.mxu0 %v607
    %628 = vmatprep.subr.bf16.mxu0 0
    %629 = vmatpush1.bf16.msra.mxu0 %v608
    %630 = vmatprep.subr.bf16.mxu0 0
    %631 = vmatpush1.bf16.msra.mxu0 %v609
    %632 = vmatprep.subr.bf16.mxu0 0
    %633 = vmatpush1.bf16.msra.mxu0 %v610
    %634 = vmatprep.subr.bf16.mxu0 0
    %635 = vmatpush1.bf16.msra.mxu0 %v611
    %636 = vmatprep.subr.bf16.mxu0 0
    %637 = vmatpush1.bf16.msra.mxu0 0
    %638 = vmatprep.subr.bf16.mxu0 0
    %639 = vmatpush1.bf16.msra.mxu0 0
    %640 = vmatprep.subr.bf16.mxu0 0
    %641 = vmatpush1.bf16.msra.mxu0 0
    %642 = vmatprep.subr.bf16.mxu0 0
    %643 = vmatpush1.bf16.msra.mxu0 0
    %644 = vmatprep.subr.bf16.mxu0 0
    %645 = vmatpush1.bf16.msra.mxu0 0
    %646 = vmatprep.subr.bf16.mxu0 0
    %647 = vmatpush1.bf16.msra.mxu0 0
    %648 = vmatprep.subr.bf16.mxu0 0
    %649 = vmatpush1.bf16.msra.mxu0 0
    %650 = vmatprep.subr.bf16.mxu0 0
    %651 = vmatpush1.bf16.msra.mxu0 0
    %652 = vmatprep.mubr.bf16.mxu0 0
    %653 = vmatmul.mubr.bf16.gmra.mrb[0].mxu0 %v565
    %v654 = vpop.f32.mrb[0].mxu0
    %v655 = vadd.f32 %v570, %v654
    %v656 = vpop.f32.mrb[0].mxu0
    %v657 = vpop.f32.mrb[0].mxu0
    %v658 = vpop.f32.mrb[0].mxu0
    %659 = vdwg.mxu0
    %660 = vst [vmem:[#allocation11] sm:$0xff] %v655
    // Predicated region
    $region62: #{tpu_custom_call.1} parent=1 // pred_check
      _
    $region63: #{tpu_custom_call.1} parent=1 // pred_check_branch
      %662 = sbr.rel (0) target = $region65
    $region64: #{tpu_custom_call.1} parent=1 // pred_region
      %s664 = ssub.s32 128, 128
      %665 = vsyncadd [#allocation4], %s664
      %s667 = sshll.u32 [#allocation11], 4
      %s668 = int_to_ptr.vmem [resolvable:$true] %s667
      %670 = dma.vmem_to_hbm [thread:$0]  %s668, 128, %s10, [#allocation4]
    $region65: #{tpu_custom_call.1} parent=1 // pred_fallthru
      _
    // Predicated region
    $region66: #{tpu_custom_call.1} parent=1 // pred_check
      _
    $region67: #{tpu_custom_call.1} parent=1 // pred_check_branch
      %672 = sbr.rel (0) target = $region69
    $region68: #{tpu_custom_call.1} parent=1 // pred_region
      %673 = dma.done [#allocation4], 128
    $region69: #{tpu_custom_call.1} parent=1 // pred_fallthru
      _
    %674 = vsyncpa [#allocation3], 1
    %675 = vsyncpa [#allocation6], 1
    %676 = vsyncpa [#allocation9], 1
    %677 = vsyncpa [#allocation4], 1

</llo_original>
